<compile_context>
chip_gen: v7x
topology: tpu7x:2x2x1
jax: 0.10.0
libtpu: 0.0.40
codegen_flags: <defaults>
</compile_context>

<pallas_src>
import functools

import jax
import jax.numpy as jnp
import numpy as np
from jax.experimental import pallas as pl
from jax.experimental.pallas import tpu as pltpu

EPS = 1e-6
LEAKY_SLOPE = 0.2
LANE = 128
# EUP reciprocal (approx) differs from an exact divide at ~1e-4 relative.
# Set to False if bit-level agreement with the PyTorch reference is required.
APPROX_RECIP = True


# ---------------------------------------------------------------------------
# In-kernel helpers (pure functions on loaded values)
# ---------------------------------------------------------------------------
def _sincnet_layernorm(y, gamma, beta):
    """SincNet LayerNorm: gamma*(y-mean)/(std_unbiased + eps) + beta."""
    n = y.shape[-1]
    mean = jnp.mean(y, axis=-1, keepdims=True)
    yc = y - mean                                     # centered, computed once
    var = jnp.sum(yc * yc, axis=-1, keepdims=True) / (n - 1)
    std = jnp.sqrt(var)
    inv = pl.reciprocal(std + EPS, approx=APPROX_RECIP)   # EUP, not VALU divide
    return (gamma * inv) * yc + beta


def _apply_act(y, act):
    if act == 'leaky_relu':
        return jnp.where(y >= 0.0, y, LEAKY_SLOPE * y)
    if act == 'relu':
        return jnp.maximum(y, 0.0)
    if act == 'tanh':
        return jnp.tanh(y)
    return y  # 'linear'


# ---------------------------------------------------------------------------
# Fused kernel: LN0 -> [Linear (+LN) (+act)] x N, all in VMEM
# ---------------------------------------------------------------------------
def _fused_mlp_kernel(*refs, fc_act, fc_use_laynorm, use_ln_inp):
    o_ref = refs[-1]
    it = iter(refs[:-1])

    x = next(it)[...].astype(jnp.float32)
    if use_ln_inp:
        g0 = next(it)[...]
        b0 = next(it)[...]
        x = _sincnet_layernorm(x, g0, b0)

    for i, act in enumerate(fc_act):
        w = next(it)[...].astype(jnp.float32)
        b = next(it)[...]
        y = jnp.dot(x, w, preferred_element_type=jnp.float32) + b
        if fc_use_laynorm[i]:
            g = next(it)[...]
            be = next(it)[...]
            y = _sincnet_layernorm(y, g, be)
        x = _apply_act(y, act)

    o_ref[...] = x.astype(o_ref.dtype)


# ---------------------------------------------------------------------------
# Wrapper: one pallas_call for the whole forward pass
# ---------------------------------------------------------------------------
def mlp_forward(x, params, *, fc_act, fc_use_laynorm, fc_use_laynorm_inp,
                ln0_gamma=None, ln0_beta=None):
    B, D0 = x.shape
    n_lay = len(params)
    out_dim = params[-1]['w_t'].shape[1]

    # Lane-dense final output: pad last layer's columns to a multiple of 128.
    # Safe only when the last layer has no LayerNorm and a 0->0 activation.
    pad_ok = (not fc_use_laynorm[-1]) and fc_act[-1] in (
        'linear', 'leaky_relu', 'relu', 'tanh')
    last_w = params[-1]['w_t']
    last_b = params[-1]['bias']
    out_dim_pad = out_dim
    if pad_ok and out_dim % LANE != 0:
        out_dim_pad = ((out_dim + LANE - 1) // LANE) * LANE
        pad = out_dim_pad - out_dim
        last_w = jnp.pad(last_w, ((0, 0), (0, pad)))
        last_b = jnp.pad(last_b, ((0, pad),))

    inputs = [x]
    in_specs = [pl.BlockSpec((B, D0), lambda i: (0, 0))]

    def add(arr):
        a2 = arr if arr.ndim == 2 else arr.reshape(1, -1)
        inputs.append(a2)
        in_specs.append(pl.BlockSpec(a2.shape, lambda i: (0, 0)))

    if fc_use_laynorm_inp:
        add(ln0_gamma)
        add(ln0_beta)
    for li, p in enumerate(params):
        add(last_w if li == n_lay - 1 else p['w_t'])
        add(last_b if li == n_lay - 1 else p['bias'])
        if fc_use_laynorm[li]:
            add(p['gamma'])
            add(p['beta'])

    kernel = functools.partial(
        _fused_mlp_kernel,
        fc_act=tuple(fc_act),
        fc_use_laynorm=tuple(bool(v) for v in fc_use_laynorm),
        use_ln_inp=bool(fc_use_laynorm_inp),
    )

    out = pl.pallas_call(
        kernel,
        out_shape=jax.ShapeDtypeStruct((B, out_dim_pad), x.dtype),
        grid=(1,),
        in_specs=in_specs,
        out_specs=pl.BlockSpec((B, out_dim_pad), lambda i: (0, 0)),
        compiler_params=pltpu.CompilerParams(
            dimension_semantics=("arbitrary",)),
    )(*inputs)

    if out_dim_pad != out_dim:
        out = out[:, :out_dim]
    return out


# ---------------------------------------------------------------------------
# Pure-JAX reference (for in-script validation)
# ---------------------------------------------------------------------------
def _ref_layernorm(x, gamma, beta):
    n = x.shape[-1]
    mean = jnp.mean(x, axis=-1, keepdims=True)
    var = jnp.sum((x - mean) ** 2, axis=-1, keepdims=True) / (n - 1)
    return gamma * (x - mean) / (jnp.sqrt(var) + EPS) + beta


def _ref_forward(x, params, *, fc_act, fc_use_laynorm, fc_use_laynorm_inp,
                 ln0_gamma, ln0_beta):
    if fc_use_laynorm_inp:
        x = _ref_layernorm(x, ln0_gamma, ln0_beta)
    for i, p in enumerate(params):
        y = x @ p['w_t'] + p['bias']
        if fc_use_laynorm[i]:
            y = _ref_layernorm(y, p['gamma'], p['beta'])
        x = _apply_act(y, fc_act[i])
    return x


# ---------------------------------------------------------------------------
# Parameter construction (matches the PyTorch __init__ init scheme)
# ---------------------------------------------------------------------------
def init_params(key, input_dim, fc_lay):
    params = []
    current = input_dim
    for dout in fc_lay:
        key, kw = jax.random.split(key)
        lim = float(np.sqrt(0.01 / (current + dout)))
        # torch stores weight as [out, in]; kept pre-transposed as [in, out].
        w_t = jax.random.uniform(kw, (current, dout), jnp.float32,
                                 minval=-lim, maxval=lim)
        params.append(dict(
            w_t=w_t,
            bias=jnp.zeros((dout,), jnp.float32),    # zero bias (as in module)
            gamma=jnp.ones((dout,), jnp.float32),    # LayerNorm gamma
            beta=jnp.zeros((dout,), jnp.float32),    # LayerNorm beta
        ))
        current = dout
    return params


# ---------------------------------------------------------------------------
if __name__ == "__main__":
    B = 8
    INPUT_DIM = 64
    FC_LAY = [128, 128, 64]
    FC_ACT = ['leaky_relu', 'leaky_relu', 'linear']
    FC_USE_LAYNORM = [True, True, False]
    FC_USE_LAYNORM_INP = True

    key = jax.random.PRNGKey(0)
    key, kx, kp = jax.random.split(key, 3)
    x = jax.random.normal(kx, (B, INPUT_DIM), jnp.float32)

    params = init_params(kp, INPUT_DIM, FC_LAY)
    ln0_gamma = jnp.ones((INPUT_DIM,), jnp.float32)
    ln0_beta = jnp.zeros((INPUT_DIM,), jnp.float32)

    out = mlp_forward(
        x, params,
        fc_act=FC_ACT,
        fc_use_laynorm=FC_USE_LAYNORM,
        fc_use_laynorm_inp=FC_USE_LAYNORM_INP,
        ln0_gamma=ln0_gamma, ln0_beta=ln0_beta,
    )
    out = jax.block_until_ready(out)
    assert out.shape == (B, FC_LAY[-1]), out.shape
    assert bool(jnp.all(jnp.isfinite(out)))

    ref = _ref_forward(
        x, params,
        fc_act=FC_ACT,
        fc_use_laynorm=FC_USE_LAYNORM,
        fc_use_laynorm_inp=FC_USE_LAYNORM_INP,
        ln0_gamma=ln0_gamma, ln0_beta=ln0_beta,
    )
    np.testing.assert_allclose(np.asarray(out), np.asarray(ref),
                               rtol=2e-3, atol=2e-4)
    print("KERNEL_OK")
</pallas_src>

<mosaic_0001>
module attributes {stable_mosaic.version = 11 : i64} {
  func.func @_fused_mlp_kernel(%arg0: i32, %arg1: memref<8x64xf32, #tpu.memory_space<vmem>>, %arg2: memref<1x64xf32, #tpu.memory_space<vmem>>, %arg3: memref<1x64xf32, #tpu.memory_space<vmem>>, %arg4: memref<64x128xf32, #tpu.memory_space<vmem>>, %arg5: memref<1x128xf32, #tpu.memory_space<vmem>>, %arg6: memref<1x128xf32, #tpu.memory_space<vmem>>, %arg7: memref<1x128xf32, #tpu.memory_space<vmem>>, %arg8: memref<128x128xf32, #tpu.memory_space<vmem>>, %arg9: memref<1x128xf32, #tpu.memory_space<vmem>>, %arg10: memref<1x128xf32, #tpu.memory_space<vmem>>, %arg11: memref<1x128xf32, #tpu.memory_space<vmem>>, %arg12: memref<128x128xf32, #tpu.memory_space<vmem>>, %arg13: memref<1x128xf32, #tpu.memory_space<vmem>>, %arg14: memref<8x128xf32, #tpu.memory_space<vmem>>) attributes {dimension_semantics = [#tpu.dimension_semantics<arbitrary>], iteration_bounds = array<i64: 1>, scalar_prefetch = 0 : i64, scratch_operands = 0 : i64, tpu.core_type = #tpu.core_type<tc>, window_params = [{pipeline_mode = #tpu.pipeline_mode<synchronous>, transform_indices = @transform_0, window_bounds = array<i64: 8, 64>}, {pipeline_mode = #tpu.pipeline_mode<synchronous>, transform_indices = @transform_1, window_bounds = array<i64: 1, 64>}, {pipeline_mode = #tpu.pipeline_mode<synchronous>, transform_indices = @transform_2, window_bounds = array<i64: 1, 64>}, {pipeline_mode = #tpu.pipeline_mode<synchronous>, transform_indices = @transform_3, window_bounds = array<i64: 64, 128>}, {pipeline_mode = #tpu.pipeline_mode<synchronous>, transform_indices = @transform_4, window_bounds = array<i64: 1, 128>}, {pipeline_mode = #tpu.pipeline_mode<synchronous>, transform_indices = @transform_5, window_bounds = array<i64: 1, 128>}, {pipeline_mode = #tpu.pipeline_mode<synchronous>, transform_indices = @transform_6, window_bounds = array<i64: 1, 128>}, {pipeline_mode = #tpu.pipeline_mode<synchronous>, transform_indices = @transform_7, window_bounds = array<i64: 128, 128>}, {pipeline_mode = #tpu.pipeline_mode<synchronous>, transform_indices = @transform_8, window_bounds = array<i64: 1, 128>}, {pipeline_mode = #tpu.pipeline_mode<synchronous>, transform_indices = @transform_9, window_bounds = array<i64: 1, 128>}, {pipeline_mode = #tpu.pipeline_mode<synchronous>, transform_indices = @transform_10, window_bounds = array<i64: 1, 128>}, {pipeline_mode = #tpu.pipeline_mode<synchronous>, transform_indices = @transform_11, window_bounds = array<i64: 128, 128>}, {pipeline_mode = #tpu.pipeline_mode<synchronous>, transform_indices = @transform_12, window_bounds = array<i64: 1, 128>}, {pipeline_mode = #tpu.pipeline_mode<synchronous>, transform_indices = @transform_13, window_bounds = array<i64: 8, 128>}]} {
    %c0 = arith.constant 0 : index
    %c0_0 = arith.constant 0 : index
    %0 = vector.load %arg1[%c0, %c0_0] : memref<8x64xf32, #tpu.memory_space<vmem>>, vector<8x64xf32>
    %c0_1 = arith.constant 0 : index
    %c0_2 = arith.constant 0 : index
    %1 = vector.load %arg2[%c0_1, %c0_2] : memref<1x64xf32, #tpu.memory_space<vmem>>, vector<1x64xf32>
    %c0_3 = arith.constant 0 : index
    %c0_4 = arith.constant 0 : index
    %2 = vector.load %arg3[%c0_3, %c0_4] : memref<1x64xf32, #tpu.memory_space<vmem>>, vector<1x64xf32>
    %cst = arith.constant dense<0.000000e+00> : vector<8xf32>
    %3 = vector.multi_reduction <add>, %0, %cst [1] : vector<8x64xf32> to vector<8xf32>
    %4 = vector.shape_cast %3 : vector<8xf32> to vector<8x1xf32>
    %cst_5 = arith.constant 6.400000e+01 : f32
    %5 = vector.broadcast %cst_5 : f32 to vector<8x1xf32>
    %6 = arith.divf %4, %5 : vector<8x1xf32>
    %7 = vector.broadcast %6 : vector<8x1xf32> to vector<8x64xf32>
    %8 = arith.subf %0, %7 : vector<8x64xf32>
    %9 = arith.mulf %8, %8 : vector<8x64xf32>
    %cst_6 = arith.constant dense<0.000000e+00> : vector<8xf32>
    %10 = vector.multi_reduction <add>, %9, %cst_6 [1] : vector<8x64xf32> to vector<8xf32>
    %11 = vector.shape_cast %10 : vector<8xf32> to vector<8x1xf32>
    %cst_7 = arith.constant 6.300000e+01 : f32
    %12 = vector.broadcast %cst_7 : f32 to vector<8x1xf32>
    %13 = arith.divf %11, %12 : vector<8x1xf32>
    %14 = math.sqrt %13 : vector<8x1xf32>
    %cst_8 = arith.constant 9.99999997E-7 : f32
    %15 = vector.broadcast %cst_8 : f32 to vector<8x1xf32>
    %16 = arith.addf %14, %15 : vector<8x1xf32>
    %17 = tpu.reciprocal %16 {approx = true} : vector<8x1xf32> -> vector<8x1xf32>
    %18 = vector.broadcast %1 : vector<1x64xf32> to vector<8x64xf32>
    %19 = vector.broadcast %17 : vector<8x1xf32> to vector<8x64xf32>
    %20 = arith.mulf %18, %19 : vector<8x64xf32>
    %21 = arith.mulf %20, %8 : vector<8x64xf32>
    %22 = vector.broadcast %2 : vector<1x64xf32> to vector<8x64xf32>
    %23 = arith.addf %21, %22 : vector<8x64xf32>
    %c0_9 = arith.constant 0 : index
    %c0_10 = arith.constant 0 : index
    %24 = vector.load %arg4[%c0_9, %c0_10] : memref<64x128xf32, #tpu.memory_space<vmem>>, vector<64x128xf32>
    %c0_11 = arith.constant 0 : index
    %c0_12 = arith.constant 0 : index
    %25 = vector.load %arg5[%c0_11, %c0_12] : memref<1x128xf32, #tpu.memory_space<vmem>>, vector<1x128xf32>
    %cst_13 = arith.constant dense<0.000000e+00> : vector<8x128xf32>
    %26 = tpu.matmul %23, %24, %cst_13 {dimension_numbers = #tpu.dot_dimension_numbers<[1], [0], [0], [1], [0, 0, 1, 1], [], []>} : vector<8x64xf32>, vector<64x128xf32>, vector<8x128xf32> -> vector<8x128xf32>
    %27 = vector.broadcast %25 : vector<1x128xf32> to vector<8x128xf32>
    %28 = arith.addf %26, %27 : vector<8x128xf32>
    %c0_14 = arith.constant 0 : index
    %c0_15 = arith.constant 0 : index
    %29 = vector.load %arg6[%c0_14, %c0_15] : memref<1x128xf32, #tpu.memory_space<vmem>>, vector<1x128xf32>
    %c0_16 = arith.constant 0 : index
    %c0_17 = arith.constant 0 : index
    %30 = vector.load %arg7[%c0_16, %c0_17] : memref<1x128xf32, #tpu.memory_space<vmem>>, vector<1x128xf32>
    %cst_18 = arith.constant dense<0.000000e+00> : vector<8xf32>
    %31 = vector.multi_reduction <add>, %28, %cst_18 [1] : vector<8x128xf32> to vector<8xf32>
    %32 = vector.shape_cast %31 : vector<8xf32> to vector<8x1xf32>
    %cst_19 = arith.constant 1.280000e+02 : f32
    %33 = vector.broadcast %cst_19 : f32 to vector<8x1xf32>
    %34 = arith.divf %32, %33 : vector<8x1xf32>
    %35 = vector.broadcast %34 : vector<8x1xf32> to vector<8x128xf32>
    %36 = arith.subf %28, %35 : vector<8x128xf32>
    %37 = arith.mulf %36, %36 : vector<8x128xf32>
    %cst_20 = arith.constant dense<0.000000e+00> : vector<8xf32>
    %38 = vector.multi_reduction <add>, %37, %cst_20 [1] : vector<8x128xf32> to vector<8xf32>
    %39 = vector.shape_cast %38 : vector<8xf32> to vector<8x1xf32>
    %cst_21 = arith.constant 1.270000e+02 : f32
    %40 = vector.broadcast %cst_21 : f32 to vector<8x1xf32>
    %41 = arith.divf %39, %40 : vector<8x1xf32>
    %42 = math.sqrt %41 : vector<8x1xf32>
    %cst_22 = arith.constant 9.99999997E-7 : f32
    %43 = vector.broadcast %cst_22 : f32 to vector<8x1xf32>
    %44 = arith.addf %42, %43 : vector<8x1xf32>
    %45 = tpu.reciprocal %44 {approx = true} : vector<8x1xf32> -> vector<8x1xf32>
    %46 = vector.broadcast %29 : vector<1x128xf32> to vector<8x128xf32>
    %47 = vector.broadcast %45 : vector<8x1xf32> to vector<8x128xf32>
    %48 = arith.mulf %46, %47 : vector<8x128xf32>
    %49 = arith.mulf %48, %36 : vector<8x128xf32>
    %50 = vector.broadcast %30 : vector<1x128xf32> to vector<8x128xf32>
    %51 = arith.addf %49, %50 : vector<8x128xf32>
    %cst_23 = arith.constant 0.000000e+00 : f32
    %52 = vector.broadcast %cst_23 : f32 to vector<8x128xf32>
    %53 = arith.cmpf oge, %51, %52 : vector<8x128xf32>
    %cst_24 = arith.constant 2.000000e-01 : f32
    %54 = vector.broadcast %cst_24 : f32 to vector<8x128xf32>
    %55 = arith.mulf %54, %51 : vector<8x128xf32>
    %56 = arith.select %53, %51, %55 : vector<8x128xi1>, vector<8x128xf32>
    %c0_25 = arith.constant 0 : index
    %c0_26 = arith.constant 0 : index
    %57 = vector.load %arg8[%c0_25, %c0_26] : memref<128x128xf32, #tpu.memory_space<vmem>>, vector<128x128xf32>
    %c0_27 = arith.constant 0 : index
    %c0_28 = arith.constant 0 : index
    %58 = vector.load %arg9[%c0_27, %c0_28] : memref<1x128xf32, #tpu.memory_space<vmem>>, vector<1x128xf32>
    %cst_29 = arith.constant dense<0.000000e+00> : vector<8x128xf32>
    %59 = tpu.matmul %56, %57, %cst_29 {dimension_numbers = #tpu.dot_dimension_numbers<[1], [0], [0], [1], [0, 0, 1, 1], [], []>} : vector<8x128xf32>, vector<128x128xf32>, vector<8x128xf32> -> vector<8x128xf32>
    %60 = vector.broadcast %58 : vector<1x128xf32> to vector<8x128xf32>
    %61 = arith.addf %59, %60 : vector<8x128xf32>
    %c0_30 = arith.constant 0 : index
    %c0_31 = arith.constant 0 : index
    %62 = vector.load %arg10[%c0_30, %c0_31] : memref<1x128xf32, #tpu.memory_space<vmem>>, vector<1x128xf32>
    %c0_32 = arith.constant 0 : index
    %c0_33 = arith.constant 0 : index
    %63 = vector.load %arg11[%c0_32, %c0_33] : memref<1x128xf32, #tpu.memory_space<vmem>>, vector<1x128xf32>
    %cst_34 = arith.constant dense<0.000000e+00> : vector<8xf32>
    %64 = vector.multi_reduction <add>, %61, %cst_34 [1] : vector<8x128xf32> to vector<8xf32>
    %65 = vector.shape_cast %64 : vector<8xf32> to vector<8x1xf32>
    %cst_35 = arith.constant 1.280000e+02 : f32
    %66 = vector.broadcast %cst_35 : f32 to vector<8x1xf32>
    %67 = arith.divf %65, %66 : vector<8x1xf32>
    %68 = vector.broadcast %67 : vector<8x1xf32> to vector<8x128xf32>
    %69 = arith.subf %61, %68 : vector<8x128xf32>
    %70 = arith.mulf %69, %69 : vector<8x128xf32>
    %cst_36 = arith.constant dense<0.000000e+00> : vector<8xf32>
    %71 = vector.multi_reduction <add>, %70, %cst_36 [1] : vector<8x128xf32> to vector<8xf32>
    %72 = vector.shape_cast %71 : vector<8xf32> to vector<8x1xf32>
    %cst_37 = arith.constant 1.270000e+02 : f32
    %73 = vector.broadcast %cst_37 : f32 to vector<8x1xf32>
    %74 = arith.divf %72, %73 : vector<8x1xf32>
    %75 = math.sqrt %74 : vector<8x1xf32>
    %cst_38 = arith.constant 9.99999997E-7 : f32
    %76 = vector.broadcast %cst_38 : f32 to vector<8x1xf32>
    %77 = arith.addf %75, %76 : vector<8x1xf32>
    %78 = tpu.reciprocal %77 {approx = true} : vector<8x1xf32> -> vector<8x1xf32>
    %79 = vector.broadcast %62 : vector<1x128xf32> to vector<8x128xf32>
    %80 = vector.broadcast %78 : vector<8x1xf32> to vector<8x128xf32>
    %81 = arith.mulf %79, %80 : vector<8x128xf32>
    %82 = arith.mulf %81, %69 : vector<8x128xf32>
    %83 = vector.broadcast %63 : vector<1x128xf32> to vector<8x128xf32>
    %84 = arith.addf %82, %83 : vector<8x128xf32>
    %cst_39 = arith.constant 0.000000e+00 : f32
    %85 = vector.broadcast %cst_39 : f32 to vector<8x128xf32>
    %86 = arith.cmpf oge, %84, %85 : vector<8x128xf32>
    %cst_40 = arith.constant 2.000000e-01 : f32
    %87 = vector.broadcast %cst_40 : f32 to vector<8x128xf32>
    %88 = arith.mulf %87, %84 : vector<8x128xf32>
    %89 = arith.select %86, %84, %88 : vector<8x128xi1>, vector<8x128xf32>
    %c0_41 = arith.constant 0 : index
    %c0_42 = arith.constant 0 : index
    %90 = vector.load %arg12[%c0_41, %c0_42] : memref<128x128xf32, #tpu.memory_space<vmem>>, vector<128x128xf32>
    %c0_43 = arith.constant 0 : index
    %c0_44 = arith.constant 0 : index
    %91 = vector.load %arg13[%c0_43, %c0_44] : memref<1x128xf32, #tpu.memory_space<vmem>>, vector<1x128xf32>
    %cst_45 = arith.constant dense<0.000000e+00> : vector<8x128xf32>
    %92 = tpu.matmul %89, %90, %cst_45 {dimension_numbers = #tpu.dot_dimension_numbers<[1], [0], [0], [1], [0, 0, 1, 1], [], []>} : vector<8x128xf32>, vector<128x128xf32>, vector<8x128xf32> -> vector<8x128xf32>
    %93 = vector.broadcast %91 : vector<1x128xf32> to vector<8x128xf32>
    %94 = arith.addf %92, %93 : vector<8x128xf32>
    %c0_46 = arith.constant 0 : index
    %c0_47 = arith.constant 0 : index
    %95 = vector.load %arg14[%c0_46, %c0_47] : memref<8x128xf32, #tpu.memory_space<vmem>>, vector<8x128xf32>
    tpu.vector_store %arg14[%c0_46, %c0_47], %94 {strides = array<i32>} : memref<8x128xf32, #tpu.memory_space<vmem>>, vector<8x128xf32>,
    return
  }
  func.func @transform_0(%arg0: i32) -> (i32, i32) {
    %c0_i32 = arith.constant 0 : i32
    %c0_i32_0 = arith.constant 0 : i32
    %c0_i32_1 = arith.constant 0 : i32
    return %c0_i32, %c0_i32_0 : i32, i32
  }
  func.func @transform_1(%arg0: i32) -> (i32, i32) {
    %c0_i32 = arith.constant 0 : i32
    %c0_i32_0 = arith.constant 0 : i32
    %c0_i32_1 = arith.constant 0 : i32
    return %c0_i32, %c0_i32_0 : i32, i32
  }
  func.func @transform_2(%arg0: i32) -> (i32, i32) {
    %c0_i32 = arith.constant 0 : i32
    %c0_i32_0 = arith.constant 0 : i32
    %c0_i32_1 = arith.constant 0 : i32
    return %c0_i32, %c0_i32_0 : i32, i32
  }
  func.func @transform_3(%arg0: i32) -> (i32, i32) {
    %c0_i32 = arith.constant 0 : i32
    %c0_i32_0 = arith.constant 0 : i32
    %c0_i32_1 = arith.constant 0 : i32
    return %c0_i32, %c0_i32_0 : i32, i32
  }
  func.func @transform_4(%arg0: i32) -> (i32, i32) {
    %c0_i32 = arith.constant 0 : i32
    %c0_i32_0 = arith.constant 0 : i32
    %c0_i32_1 = arith.constant 0 : i32
    return %c0_i32, %c0_i32_0 : i32, i32
  }
  func.func @transform_5(%arg0: i32) -> (i32, i32) {
    %c0_i32 = arith.constant 0 : i32
    %c0_i32_0 = arith.constant 0 : i32
    %c0_i32_1 = arith.constant 0 : i32
    return %c0_i32, %c0_i32_0 : i32, i32
  }
  func.func @transform_6(%arg0: i32) -> (i32, i32) {
    %c0_i32 = arith.constant 0 : i32
    %c0_i32_0 = arith.constant 0 : i32
    %c0_i32_1 = arith.constant 0 : i32
    return %c0_i32, %c0_i32_0 : i32, i32
  }
  func.func @transform_7(%arg0: i32) -> (i32, i32) {
    %c0_i32 = arith.constant 0 : i32
    %c0_i32_0 = arith.constant 0 : i32
    %c0_i32_1 = arith.constant 0 : i32
    return %c0_i32, %c0_i32_0 : i32, i32
  }
  func.func @transform_8(%arg0: i32) -> (i32, i32) {
    %c0_i32 = arith.constant 0 : i32
    %c0_i32_0 = arith.constant 0 : i32
    %c0_i32_1 = arith.constant 0 : i32
    return %c0_i32, %c0_i32_0 : i32, i32
  }
  func.func @transform_9(%arg0: i32) -> (i32, i32) {
    %c0_i32 = arith.constant 0 : i32
    %c0_i32_0 = arith.constant 0 : i32
    %c0_i32_1 = arith.constant 0 : i32
    return %c0_i32, %c0_i32_0 : i32, i32
  }
  func.func @transform_10(%arg0: i32) -> (i32, i32) {
    %c0_i32 = arith.constant 0 : i32
    %c0_i32_0 = arith.constant 0 : i32
    %c0_i32_1 = arith.constant 0 : i32
    return %c0_i32, %c0_i32_0 : i32, i32
  }
  func.func @transform_11(%arg0: i32) -> (i32, i32) {
    %c0_i32 = arith.constant 0 : i32
    %c0_i32_0 = arith.constant 0 : i32
    %c0_i32_1 = arith.constant 0 : i32
    return %c0_i32, %c0_i32_0 : i32, i32
  }
  func.func @transform_12(%arg0: i32) -> (i32, i32) {
    %c0_i32 = arith.constant 0 : i32
    %c0_i32_0 = arith.constant 0 : i32
    %c0_i32_1 = arith.constant 0 : i32
    return %c0_i32, %c0_i32_0 : i32, i32
  }
  func.func @transform_13(%arg0: i32) -> (i32, i32) {
    %c0_i32 = arith.constant 0 : i32
    %c0_i32_0 = arith.constant 0 : i32
    %c0_i32_1 = arith.constant 0 : i32
    return %c0_i32, %c0_i32_0 : i32, i32
  }
}

</mosaic_0001>

<llo_original>
// kernel: tpu_custom_call.1
$region0: #{tpu_custom_call.1}
  #allocation0 [shape = 'u32[]', space=smem, size = 0x4, offset = 0x4, fixed_abs, tag = 'smem constant byte address 0x4 - core index']
  #allocation1 [shape = 'u32[144,128]{1,0:T(1,128)}', space=vmem, size = 0x12000, scoped, tag = 'internal scratch']
  %s0 = inlined_call_operand.hbm [shape: f32[8,64], index: 0, kind: input, shape index: {}]
  %s1 = inlined_call_operand.vmem [shape: f32[1,64], index: 1, kind: input, shape index: {}]
  %s2 = inlined_call_operand.vmem [shape: f32[1,64], index: 2, kind: input, shape index: {}]
  %s3 = inlined_call_operand.hbm [shape: f32[64,128], index: 3, kind: input, shape index: {}]
  %s4 = inlined_call_operand.vmem [shape: f32[1,128], index: 4, kind: input, shape index: {}]
  %s5 = inlined_call_operand.vmem [shape: f32[1,128], index: 5, kind: input, shape index: {}]
  %s6 = inlined_call_operand.vmem [shape: f32[1,128], index: 6, kind: input, shape index: {}]
  %s7 = inlined_call_operand.hbm [shape: f32[128,128], index: 7, kind: input, shape index: {}]
  %s8 = inlined_call_operand.vmem [shape: f32[1,128], index: 8, kind: input, shape index: {}]
  %s9 = inlined_call_operand.vmem [shape: f32[1,128], index: 9, kind: input, shape index: {}]
  %s10 = inlined_call_operand.vmem [shape: f32[1,128], index: 10, kind: input, shape index: {}]
  %s11 = inlined_call_operand.hbm [shape: f32[128,128], index: 11, kind: input, shape index: {}]
  %s12 = inlined_call_operand.vmem [shape: f32[1,128], index: 12, kind: input, shape index: {}]
  %s13 = inlined_call_operand.hbm [shape: f32[8,128], index: 13, kind: output, shape index: {}]
  %s14 = sld [smem:[#allocation0]]
  $region78: #{tpu_custom_call.1} parent=0
    _
  %s16 = ssub.s32 1, %s14
  %s17 = scalar_select 0, %s16, %s14
  $region1: #{tpu_custom_call.1} parent=0
    #allocation2 [shape = 'u8[4096]{0}', space=vmem, size = 0x1000, scoped, tag = 'input window, operand 0, single buffered']
    #allocation3 [shape = 's32[1]{0}', space=sflag, size = 0x4, scoped, tag = 'scoped memory for tpu_custom_call.1']
    #allocation4 [shape = 's32[1]{0}', space=sflag, size = 0x4, scoped, tag = 'scoped memory for tpu_custom_call.1']
    #allocation5 [shape = 'u8[32768]{0}', space=vmem, size = 0x8000, scoped, tag = 'input window, operand 3, single buffered']
    #allocation6 [shape = 's32[1]{0}', space=sflag, size = 0x4, scoped, tag = 'scoped memory for tpu_custom_call.1']
    #allocation7 [shape = 'u8[65536]{0}', space=vmem, size = 0x10000, scoped, tag = 'input window, operand 7, single buffered']
    #allocation8 [shape = 'u8[65536]{0}', space=vmem, size = 0x10000, scoped, tag = 'input window, operand 11, single buffered']
    #allocation9 [shape = 's32[1]{0}', space=sflag, size = 0x4, scoped, tag = 'scoped memory for tpu_custom_call.1']
    #allocation10 [shape = 'u8[4096]{0}', space=vmem, size = 0x1000, scoped, tag = 'output window, operand 0, single buffered']
    %18 = vsyncpa [#allocation3], 0
    %19 = vsyncpa [#allocation6], 0
    %20 = vsyncpa [#allocation9], 0
    %21 = vsyncpa [#allocation4], 0
    // Predicated region
    $region2: #{tpu_custom_call.1} parent=1 // pred_check
      _
    $region3: #{tpu_custom_call.1} parent=1 // pred_check_branch
      %23 = sbr.rel (0) target = $region5
    $region4: #{tpu_custom_call.1} parent=1 // pred_region
      %s25 = ssub.s32 128, 128
      %26 = vsyncadd [#allocation3], %s25
      %s28 = sshll.u32 [#allocation2], 4
      %s29 = int_to_ptr.vmem [resolvable:$true] %s28
      %31 = dma.hbm_to_vmem [thread:$0]  %s0, 128, %s29, [#allocation3]
    $region5: #{tpu_custom_call.1} parent=1 // pred_fallthru
      _
    // Predicated region
    $region6: #{tpu_custom_call.1} parent=1 // pred_check
      _
    $region7: #{tpu_custom_call.1} parent=1 // pred_check_branch
      %33 = sbr.rel (0) target = $region9
    $region8: #{tpu_custom_call.1} parent=1 // pred_region
      _
    $region9: #{tpu_custom_call.1} parent=1 // pred_fallthru
      _
    // Predicated region
    $region10: #{tpu_custom_call.1} parent=1 // pred_check
      _
    $region11: #{tpu_custom_call.1} parent=1 // pred_check_branch
      %35 = sbr.rel (0) target = $region13
    $region12: #{tpu_custom_call.1} parent=1 // pred_region
      _
    $region13: #{tpu_custom_call.1} parent=1 // pred_fallthru
      _
    // Predicated region
    $region14: #{tpu_custom_call.1} parent=1 // pred_check
      _
    $region15: #{tpu_custom_call.1} parent=1 // pred_check_branch
      %37 = sbr.rel (0) target = $region17
    $region16: #{tpu_custom_call.1} parent=1 // pred_region
      %s39 = ssub.s32 1024, 1024
      %40 = vsyncadd [#allocation6], %s39
      %s41 = sshll.u32 [#allocation5], 4
      %s42 = int_to_ptr.vmem [resolvable:$true] %s41
      %47 = dma.hbm_to_vmem [thread:$0]  %s3, 1024, %s42, [#allocation6], 128, 128, 8
    $region17: #{tpu_custom_call.1} parent=1 // pred_fallthru
      _
    // Predicated region
    $region18: #{tpu_custom_call.1} parent=1 // pred_check
      _
    $region19: #{tpu_custom_call.1} parent=1 // pred_check_branch
      %49 = sbr.rel (0) target = $region21
    $region20: #{tpu_custom_call.1} parent=1 // pred_region
      _
    $region21: #{tpu_custom_call.1} parent=1 // pred_fallthru
      _
    // Predicated region
    $region22: #{tpu_custom_call.1} parent=1 // pred_check
      _
    $region23: #{tpu_custom_call.1} parent=1 // pred_check_branch
      %51 = sbr.rel (0) target = $region25
    $region24: #{tpu_custom_call.1} parent=1 // pred_region
      _
    $region25: #{tpu_custom_call.1} parent=1 // pred_fallthru
      _
    // Predicated region
    $region26: #{tpu_custom_call.1} parent=1 // pred_check
      _
    $region27: #{tpu_custom_call.1} parent=1 // pred_check_branch
      %53 = sbr.rel (0) target = $region29
    $region28: #{tpu_custom_call.1} parent=1 // pred_region
      _
    $region29: #{tpu_custom_call.1} parent=1 // pred_fallthru
      _
    // Predicated region
    $region30: #{tpu_custom_call.1} parent=1 // pred_check
      _
    $region31: #{tpu_custom_call.1} parent=1 // pred_check_branch
      %55 = sbr.rel (0) target = $region33
    $region32: #{tpu_custom_call.1} parent=1 // pred_region
      %s57 = ssub.s32 2048, 2048
      %58 = vsyncadd [#allocation6], %s57
      %s59 = sshll.u32 [#allocation7], 4
      %s60 = int_to_ptr.vmem [resolvable:$true] %s59
      %65 = dma.hbm_to_vmem [thread:$0]  %s7, 2048, %s60, [#allocation6], 128, 128, 8
    $region33: #{tpu_custom_call.1} parent=1 // pred_fallthru
      _
    // Predicated region
    $region34: #{tpu_custom_call.1} parent=1 // pred_check
      _
    $region35: #{tpu_custom_call.1} parent=1 // pred_check_branch
      %67 = sbr.rel (0) target = $region37
    $region36: #{tpu_custom_call.1} parent=1 // pred_region
      _
    $region37: #{tpu_custom_call.1} parent=1 // pred_fallthru
      _
    // Predicated region
    $region38: #{tpu_custom_call.1} parent=1 // pred_check
      _
    $region39: #{tpu_custom_call.1} parent=1 // pred_check_branch
      %69 = sbr.rel (0) target = $region41
    $region40: #{tpu_custom_call.1} parent=1 // pred_region
      _
    $region41: #{tpu_custom_call.1} parent=1 // pred_fallthru
      _
    // Predicated region
    $region42: #{tpu_custom_call.1} parent=1 // pred_check
      _
    $region43: #{tpu_custom_call.1} parent=1 // pred_check_branch
      %71 = sbr.rel (0) target = $region45
    $region44: #{tpu_custom_call.1} parent=1 // pred_region
      _
    $region45: #{tpu_custom_call.1} parent=1 // pred_fallthru
      _
    // Predicated region
    $region46: #{tpu_custom_call.1} parent=1 // pred_check
      _
    $region47: #{tpu_custom_call.1} parent=1 // pred_check_branch
      %73 = sbr.rel (0) target = $region49
    $region48: #{tpu_custom_call.1} parent=1 // pred_region
      %s75 = ssub.s32 2048, 2048
      %76 = vsyncadd [#allocation9], %s75
      %s77 = sshll.u32 [#allocation8], 4
      %s78 = int_to_ptr.vmem [resolvable:$true] %s77
      %83 = dma.hbm_to_vmem [thread:$0]  %s11, 2048, %s78, [#allocation9], 128, 128, 8
    $region49: #{tpu_custom_call.1} parent=1 // pred_fallthru
      _
    // Predicated region
    $region50: #{tpu_custom_call.1} parent=1 // pred_check
      _
    $region51: #{tpu_custom_call.1} parent=1 // pred_check_branch
      %85 = sbr.rel (0) target = $region53
    $region52: #{tpu_custom_call.1} parent=1 // pred_region
      _
    $region53: #{tpu_custom_call.1} parent=1 // pred_fallthru
      _
    // Predicated region
    $region54: #{tpu_custom_call.1} parent=1 // pred_check
      _
    $region55: #{tpu_custom_call.1} parent=1 // pred_check_branch
      %87 = sbr.rel (0) target = $region57
    $region56: #{tpu_custom_call.1} parent=1 // pred_region
      %88 = dma.done [#allocation3], 128
    $region57: #{tpu_custom_call.1} parent=1 // pred_fallthru
      _
    // Predicated region
    $region58: #{tpu_custom_call.1} parent=1 // pred_check
      _
    $region59: #{tpu_custom_call.1} parent=1 // pred_check_branch
      %90 = sbr.rel (0) target = $region61
    $region60: #{tpu_custom_call.1} parent=1 // pred_region
      %91 = dma.done [#allocation6], 1024
    $region61: #{tpu_custom_call.1} parent=1 // pred_fallthru
      _
    // Predicated region
    $region62: #{tpu_custom_call.1} parent=1 // pred_check
      _
    $region63: #{tpu_custom_call.1} parent=1 // pred_check_branch
      %93 = sbr.rel (0) target = $region65
    $region64: #{tpu_custom_call.1} parent=1 // pred_region
      %94 = dma.done [#allocation6], 2048
    $region65: #{tpu_custom_call.1} parent=1 // pred_fallthru
      _
    // Predicated region
    $region66: #{tpu_custom_call.1} parent=1 // pred_check
      _
    $region67: #{tpu_custom_call.1} parent=1 // pred_check_branch
      %96 = sbr.rel (0) target = $region69
    $region68: #{tpu_custom_call.1} parent=1 // pred_region
      %97 = dma.done [#allocation9], 2048
    $region69: #{tpu_custom_call.1} parent=1 // pred_fallthru
      _
    %v98 = vld [vmem:[#allocation2] sm:$0xff]
    %v99 = vld [vmem:[%s1] sm:$0x1]
    %v100 = vld [vmem:[%s2] sm:$0x1]
    %vm101 = vcmask 523264
    %v102 = vsel %vm101, %v98, 0.0
    %103 = vadd.xlane.f32.xlu0 %v102
    %v104 = vpop.xlane.xlu0 %103
    %v105 = vrcp.pop 64.0
    %v106 = vmul.f32 %v104, %v105
    %v107 = vsub.f32 %v98, %v106
    %v108 = vmul.f32 %v107, %v107
    %v109 = vsel %vm101, %v108, 0.0
    %110 = vadd.xlane.f32.xlu0 %v109
    %v111 = vpop.xlane.xlu0 %110
    %v112 = vrcp.pop 63.0
    %v113 = vmul.f32 %v111, %v112
    %v114 = vrsqrt.pop %v113
    %v115 = vmul.f32 %v113, %v114
    %vm116 = vcmp.eq.f32.partialorder %v113, inf
    %v117 = vsel %vm116, %v113, %v115
    %vm118 = vcmp.eq.f32.partialorder %v113, 0.0
    %v119 = vand.u32 %v113, 2147483648
    %v120 = vsel %vm118, %v119, %v117
    %v121 = vadd.f32 %v120, 1e-06
    %v122 = vrcp.pop %v121
    %v124 = vlaneseq
    %v125 = vshrl.u32 %v124, 7
    %v126 = vsub.s32 0, %v125
    %v127 = vrot.slane %v99, %v126
    %v129 = vmul.f32 %v127, %v122
    %v130 = vmul.f32 %v129, %v107
    %v132 = vlaneseq
    %v133 = vshrl.u32 %v132, 7
    %v134 = vsub.s32 0, %v133
    %v135 = vrot.slane %v100, %v134
    %v137 = vadd.f32 %v130, %v135
    %v138 = vld [vmem:[#allocation5] sm:$0xff]
    %v139 = vld [vmem:[#allocation5 + $0x8] sm:$0xff]
    %v140 = vld [vmem:[#allocation5 + $0x10] sm:$0xff]
    %v141 = vld [vmem:[#allocation5 + $0x18] sm:$0xff]
    %v142 = vld [vmem:[#allocation5 + $0x20] sm:$0xff]
    %v143 = vld [vmem:[#allocation5 + $0x28] sm:$0xff]
    %v144 = vld [vmem:[#allocation5 + $0x30] sm:$0xff]
    %v145 = vld [vmem:[#allocation5 + $0x38] sm:$0xff]
    %v146 = vld [vmem:[%s4] sm:$0x1]
    %v148 = vlaneseq
    %v149 = vshrl.u32 %v148, 7
    %v150 = vsub.s32 0, %v149
    %v151 = vrot.slane %v146, %v150
    %v154 = vsel %vm101, %v137, 0
    %156 = vmatprep.subr.mxu0 0.0
    %157 = vmatpush1.msra.mxu0 %v138
    %158 = vmatprep.subr.mxu0 0.0
    %159 = vmatpush1.msra.mxu0 %v139
    %160 = vmatprep.subr.mxu0 0.0
    %161 = vmatpush1.msra.mxu0 %v140
    %162 = vmatprep.subr.mxu0 0.0
    %163 = vmatpush1.msra.mxu0 %v141
    %164 = vmatprep.subr.mxu0 0.0
    %165 = vmatpush1.msra.mxu0 %v142
    %166 = vmatprep.subr.mxu0 0.0
    %167 = vmatpush1.msra.mxu0 %v143
    %168 = vmatprep.subr.mxu0 0.0
    %169 = vmatpush1.msra.mxu0 %v144
    %170 = vmatprep.subr.mxu0 0.0
    %171 = vmatpush1.msra.mxu0 %v145
    %172 = vmatprep.subr.mxu0 0.0
    %173 = vmatpush1.msra.mxu0 0.0
    %174 = vmatprep.subr.mxu0 0.0
    %175 = vmatpush1.msra.mxu0 0.0
    %176 = vmatprep.subr.mxu0 0.0
    %177 = vmatpush1.msra.mxu0 0.0
    %178 = vmatprep.subr.mxu0 0.0
    %179 = vmatpush1.msra.mxu0 0.0
    %180 = vmatprep.subr.mxu0 0.0
    %181 = vmatpush1.msra.mxu0 0.0
    %182 = vmatprep.subr.mxu0 0.0
    %183 = vmatpush1.msra.mxu0 0.0
    %184 = vmatprep.subr.mxu0 0.0
    %185 = vmatpush1.msra.mxu0 0.0
    %186 = vmatprep.subr.mxu0 0.0
    %187 = vmatpush1.msra.mxu0 0.0
    %188 = vmatprep.subr.mxu0 0.0
    %189 = vmatpush1.msra.mxu0 0.0
    %190 = vmatprep.subr.mxu0 0.0
    %191 = vmatpush1.msra.mxu0 0.0
    %192 = vmatprep.subr.mxu0 0.0
    %193 = vmatpush1.msra.mxu0 0.0
    %194 = vmatprep.subr.mxu0 0.0
    %195 = vmatpush1.msra.mxu0 0.0
    %196 = vmatprep.subr.mxu0 0.0
    %197 = vmatpush1.msra.mxu0 0.0
    %198 = vmatprep.subr.mxu0 0.0
    %199 = vmatpush1.msra.mxu0 0.0
    %200 = vmatprep.subr.mxu0 0.0
    %201 = vmatpush1.msra.mxu0 0.0
    %202 = vmatprep.subr.mxu0 0.0
    %203 = vmatpush1.msra.mxu0 0.0
    %204 = vmatprep.subr.mxu0 0.0
    %205 = vmatpush1.msra.mxu0 0.0
    %206 = vmatprep.subr.mxu0 0.0
    %207 = vmatpush1.msra.mxu0 0.0
    %208 = vmatprep.subr.mxu0 0.0
    %209 = vmatpush1.msra.mxu0 0.0
    %210 = vmatprep.subr.mxu0 0.0
    %211 = vmatpush1.msra.mxu0 0.0
    %212 = vmatprep.subr.mxu0 0.0
    %213 = vmatpush1.msra.mxu0 0.0
    %214 = vmatprep.subr.mxu0 0.0
    %215 = vmatpush1.msra.mxu0 0.0
    %216 = vmatprep.subr.mxu0 0.0
    %217 = vmatpush1.msra.mxu0 0.0
    %218 = vmatprep.subr.mxu0 0.0
    %219 = vmatpush1.msra.mxu0 0.0
    %220 = vmatprep.mubr.f32.mxu0 0.0
    %221 = vmatmul.mubr.f32.gmra.mrb[0].mxu0 %v154
    %v222 = vpop.f32.mrb[0].mxu0
    %v223 = vadd.f32 %v151, %v222
    %v224 = vpop.f32.mrb[0].mxu0
    %225 = vdwg.mxu0
    %v226 = vld [vmem:[%s5] sm:$0x1]
    %v227 = vld [vmem:[%s6] sm:$0x1]
    %228 = vadd.xlane.f32.xlu0 %v223
    %v229 = vpop.xlane.xlu0 %228
    %v230 = vrcp.pop 128.0
    %v231 = vmul.f32 %v229, %v230
    %v232 = vsub.f32 %v223, %v231
    %v233 = vmul.f32 %v232, %v232
    %234 = vadd.xlane.f32.xlu0 %v233
    %v235 = vpop.xlane.xlu0 %234
    %v236 = vrcp.pop 127.0
    %v237 = vmul.f32 %v235, %v236
    %v238 = vrsqrt.pop %v237
    %v239 = vmul.f32 %v237, %v238
    %vm240 = vcmp.eq.f32.partialorder %v237, inf
    %v241 = vsel %vm240, %v237, %v239
    %vm242 = vcmp.eq.f32.partialorder %v237, 0.0
    %v243 = vand.u32 %v237, 2147483648
    %v244 = vsel %vm242, %v243, %v241
    %v245 = vadd.f32 %v244, 1e-06
    %v246 = vrcp.pop %v245
    %v248 = vlaneseq
    %v249 = vshrl.u32 %v248, 7
    %v250 = vsub.s32 0, %v249
    %v251 = vrot.slane %v226, %v250
    %v253 = vmul.f32 %v251, %v246
    %v254 = vmul.f32 %v253, %v232
    %v256 = vlaneseq
    %v257 = vshrl.u32 %v256, 7
    %v258 = vsub.s32 0, %v257
    %v259 = vrot.slane %v227, %v258
    %v261 = vadd.f32 %v254, %v259
    %vm262 = vcmp.ge.f32.partialorder %v261, 0.0
    %v263 = vmul.f32 %v261, 0.2
    %v264 = vsel %vm262, %v261, %v263
    %v265 = vld [vmem:[#allocation7] sm:$0xff]
    %v266 = vld [vmem:[#allocation7 + $0x8] sm:$0xff]
    %v267 = vld [vmem:[#allocation7 + $0x10] sm:$0xff]
    %v268 = vld [vmem:[#allocation7 + $0x18] sm:$0xff]
    %v269 = vld [vmem:[#allocation7 + $0x20] sm:$0xff]
    %v270 = vld [vmem:[#allocation7 + $0x28] sm:$0xff]
    %v271 = vld [vmem:[#allocation7 + $0x30] sm:$0xff]
    %v272 = vld [vmem:[#allocation7 + $0x38] sm:$0xff]
    %v273 = vld [vmem:[#allocation7 + $0x40] sm:$0xff]
    %v274 = vld [vmem:[#allocation7 + $0x48] sm:$0xff]
    %v275 = vld [vmem:[#allocation7 + $0x50] sm:$0xff]
    %v276 = vld [vmem:[#allocation7 + $0x58] sm:$0xff]
    %v277 = vld [vmem:[#allocation7 + $0x60] sm:$0xff]
    %v278 = vld [vmem:[#allocation7 + $0x68] sm:$0xff]
    %v279 = vld [vmem:[#allocation7 + $0x70] sm:$0xff]
    %v280 = vld [vmem:[#allocation7 + $0x78] sm:$0xff]
    %v281 = vld [vmem:[%s8] sm:$0x1]
    %v283 = vlaneseq
    %v284 = vshrl.u32 %v283, 7
    %v285 = vsub.s32 0, %v284
    %v286 = vrot.slane %v281, %v285
    %288 = vmatprep.subr.mxu0 0.0
    %289 = vmatpush1.msra.mxu0 %v265
    %290 = vmatprep.subr.mxu0 0.0
    %291 = vmatpush1.msra.mxu0 %v266
    %292 = vmatprep.subr.mxu0 0.0
    %293 = vmatpush1.msra.mxu0 %v267
    %294 = vmatprep.subr.mxu0 0.0
    %295 = vmatpush1.msra.mxu0 %v268
    %296 = vmatprep.subr.mxu0 0.0
    %297 = vmatpush1.msra.mxu0 %v269
    %298 = vmatprep.subr.mxu0 0.0
    %299 = vmatpush1.msra.mxu0 %v270
    %300 = vmatprep.subr.mxu0 0.0
    %301 = vmatpush1.msra.mxu0 %v271
    %302 = vmatprep.subr.mxu0 0.0
    %303 = vmatpush1.msra.mxu0 %v272
    %304 = vmatprep.subr.mxu0 0.0
    %305 = vmatpush1.msra.mxu0 %v273
    %306 = vmatprep.subr.mxu0 0.0
    %307 = vmatpush1.msra.mxu0 %v274
    %308 = vmatprep.subr.mxu0 0.0
    %309 = vmatpush1.msra.mxu0 %v275
    %310 = vmatprep.subr.mxu0 0.0
    %311 = vmatpush1.msra.mxu0 %v276
    %312 = vmatprep.subr.mxu0 0.0
    %313 = vmatpush1.msra.mxu0 %v277
    %314 = vmatprep.subr.mxu0 0.0
    %315 = vmatpush1.msra.mxu0 %v278
    %316 = vmatprep.subr.mxu0 0.0
    %317 = vmatpush1.msra.mxu0 %v279
    %318 = vmatprep.subr.mxu0 0.0
    %319 = vmatpush1.msra.mxu0 %v280
    %320 = vmatprep.subr.mxu0 0.0
    %321 = vmatpush1.msra.mxu0 0.0
    %322 = vmatprep.subr.mxu0 0.0
    %323 = vmatpush1.msra.mxu0 0.0
    %324 = vmatprep.subr.mxu0 0.0
    %325 = vmatpush1.msra.mxu0 0.0
    %326 = vmatprep.subr.mxu0 0.0
    %327 = vmatpush1.msra.mxu0 0.0
    %328 = vmatprep.subr.mxu0 0.0
    %329 = vmatpush1.msra.mxu0 0.0
    %330 = vmatprep.subr.mxu0 0.0
    %331 = vmatpush1.msra.mxu0 0.0
    %332 = vmatprep.subr.mxu0 0.0
    %333 = vmatpush1.msra.mxu0 0.0
    %334 = vmatprep.subr.mxu0 0.0
    %335 = vmatpush1.msra.mxu0 0.0
    %336 = vmatprep.subr.mxu0 0.0
    %337 = vmatpush1.msra.mxu0 0.0
    %338 = vmatprep.subr.mxu0 0.0
    %339 = vmatpush1.msra.mxu0 0.0
    %340 = vmatprep.subr.mxu0 0.0
    %341 = vmatpush1.msra.mxu0 0.0
    %342 = vmatprep.subr.mxu0 0.0
    %343 = vmatpush1.msra.mxu0 0.0
    %344 = vmatprep.subr.mxu0 0.0
    %345 = vmatpush1.msra.mxu0 0.0
    %346 = vmatprep.subr.mxu0 0.0
    %347 = vmatpush1.msra.mxu0 0.0
    %348 = vmatprep.subr.mxu0 0.0
    %349 = vmatpush1.msra.mxu0 0.0
    %350 = vmatprep.subr.mxu0 0.0
    %351 = vmatpush1.msra.mxu0 0.0
    %352 = vmatprep.mubr.f32.mxu0 0.0
    %353 = vmatmul.mubr.f32.gmra.mrb[0].mxu0 %v264
    %v354 = vpop.f32.mrb[0].mxu0
    %v355 = vadd.f32 %v286, %v354
    %v356 = vpop.f32.mrb[0].mxu0
    %357 = vdwg.mxu0
    %v358 = vld [vmem:[%s9] sm:$0x1]
    %v359 = vld [vmem:[%s10] sm:$0x1]
    %360 = vadd.xlane.f32.xlu0 %v355
    %v361 = vpop.xlane.xlu0 %360
    %v362 = vmul.f32 %v361, %v230
    %v363 = vsub.f32 %v355, %v362
    %v364 = vmul.f32 %v363, %v363
    %365 = vadd.xlane.f32.xlu0 %v364
    %v366 = vpop.xlane.xlu0 %365
    %v367 = vmul.f32 %v366, %v236
    %v368 = vrsqrt.pop %v367
    %v369 = vmul.f32 %v367, %v368
    %vm370 = vcmp.eq.f32.partialorder %v367, inf
    %v371 = vsel %vm370, %v367, %v369
    %vm372 = vcmp.eq.f32.partialorder %v367, 0.0
    %v373 = vand.u32 %v367, 2147483648
    %v374 = vsel %vm372, %v373, %v371
    %v375 = vadd.f32 %v374, 1e-06
    %v376 = vrcp.pop %v375
    %v378 = vlaneseq
    %v379 = vshrl.u32 %v378, 7
    %v380 = vsub.s32 0, %v379
    %v381 = vrot.slane %v358, %v380
    %v383 = vmul.f32 %v381, %v376
    %v384 = vmul.f32 %v383, %v363
    %v386 = vlaneseq
    %v387 = vshrl.u32 %v386, 7
    %v388 = vsub.s32 0, %v387
    %v389 = vrot.slane %v359, %v388
    %v391 = vadd.f32 %v384, %v389
    %vm392 = vcmp.ge.f32.partialorder %v391, 0.0
    %v393 = vmul.f32 %v391, 0.2
    %v394 = vsel %vm392, %v391, %v393
    %v395 = vld [vmem:[#allocation8] sm:$0xff]
    %v396 = vld [vmem:[#allocation8 + $0x8] sm:$0xff]
    %v397 = vld [vmem:[#allocation8 + $0x10] sm:$0xff]
    %v398 = vld [vmem:[#allocation8 + $0x18] sm:$0xff]
    %v399 = vld [vmem:[#allocation8 + $0x20] sm:$0xff]
    %v400 = vld [vmem:[#allocation8 + $0x28] sm:$0xff]
    %v401 = vld [vmem:[#allocation8 + $0x30] sm:$0xff]
    %v402 = vld [vmem:[#allocation8 + $0x38] sm:$0xff]
    %v403 = vld [vmem:[#allocation8 + $0x40] sm:$0xff]
    %v404 = vld [vmem:[#allocation8 + $0x48] sm:$0xff]
    %v405 = vld [vmem:[#allocation8 + $0x50] sm:$0xff]
    %v406 = vld [vmem:[#allocation8 + $0x58] sm:$0xff]
    %v407 = vld [vmem:[#allocation8 + $0x60] sm:$0xff]
    %v408 = vld [vmem:[#allocation8 + $0x68] sm:$0xff]
    %v409 = vld [vmem:[#allocation8 + $0x70] sm:$0xff]
    %v410 = vld [vmem:[#allocation8 + $0x78] sm:$0xff]
    %v411 = vld [vmem:[%s12] sm:$0x1]
    %v413 = vlaneseq
    %v414 = vshrl.u32 %v413, 7
    %v415 = vsub.s32 0, %v414
    %v416 = vrot.slane %v411, %v415
    %418 = vmatprep.subr.mxu0 0.0
    %419 = vmatpush1.msra.mxu0 %v395
    %420 = vmatprep.subr.mxu0 0.0
    %421 = vmatpush1.msra.mxu0 %v396
    %422 = vmatprep.subr.mxu0 0.0
    %423 = vmatpush1.msra.mxu0 %v397
    %424 = vmatprep.subr.mxu0 0.0
    %425 = vmatpush1.msra.mxu0 %v398
    %426 = vmatprep.subr.mxu0 0.0
    %427 = vmatpush1.msra.mxu0 %v399
    %428 = vmatprep.subr.mxu0 0.0
    %429 = vmatpush1.msra.mxu0 %v400
    %430 = vmatprep.subr.mxu0 0.0
    %431 = vmatpush1.msra.mxu0 %v401
    %432 = vmatprep.subr.mxu0 0.0
    %433 = vmatpush1.msra.mxu0 %v402
    %434 = vmatprep.subr.mxu0 0.0
    %435 = vmatpush1.msra.mxu0 %v403
    %436 = vmatprep.subr.mxu0 0.0
    %437 = vmatpush1.msra.mxu0 %v404
    %438 = vmatprep.subr.mxu0 0.0
    %439 = vmatpush1.msra.mxu0 %v405
    %440 = vmatprep.subr.mxu0 0.0
    %441 = vmatpush1.msra.mxu0 %v406
    %442 = vmatprep.subr.mxu0 0.0
    %443 = vmatpush1.msra.mxu0 %v407
    %444 = vmatprep.subr.mxu0 0.0
    %445 = vmatpush1.msra.mxu0 %v408
    %446 = vmatprep.subr.mxu0 0.0
    %447 = vmatpush1.msra.mxu0 %v409
    %448 = vmatprep.subr.mxu0 0.0
    %449 = vmatpush1.msra.mxu0 %v410
    %450 = vmatprep.subr.mxu0 0.0
    %451 = vmatpush1.msra.mxu0 0.0
    %452 = vmatprep.subr.mxu0 0.0
    %453 = vmatpush1.msra.mxu0 0.0
    %454 = vmatprep.subr.mxu0 0.0
    %455 = vmatpush1.msra.mxu0 0.0
    %456 = vmatprep.subr.mxu0 0.0
    %457 = vmatpush1.msra.mxu0 0.0
    %458 = vmatprep.subr.mxu0 0.0
    %459 = vmatpush1.msra.mxu0 0.0
    %460 = vmatprep.subr.mxu0 0.0
    %461 = vmatpush1.msra.mxu0 0.0
    %462 = vmatprep.subr.mxu0 0.0
    %463 = vmatpush1.msra.mxu0 0.0
    %464 = vmatprep.subr.mxu0 0.0
    %465 = vmatpush1.msra.mxu0 0.0
    %466 = vmatprep.subr.mxu0 0.0
    %467 = vmatpush1.msra.mxu0 0.0
    %468 = vmatprep.subr.mxu0 0.0
    %469 = vmatpush1.msra.mxu0 0.0
    %470 = vmatprep.subr.mxu0 0.0
    %471 = vmatpush1.msra.mxu0 0.0
    %472 = vmatprep.subr.mxu0 0.0
    %473 = vmatpush1.msra.mxu0 0.0
    %474 = vmatprep.subr.mxu0 0.0
    %475 = vmatpush1.msra.mxu0 0.0
    %476 = vmatprep.subr.mxu0 0.0
    %477 = vmatpush1.msra.mxu0 0.0
    %478 = vmatprep.subr.mxu0 0.0
    %479 = vmatpush1.msra.mxu0 0.0
    %480 = vmatprep.subr.mxu0 0.0
    %481 = vmatpush1.msra.mxu0 0.0
    %482 = vmatprep.mubr.f32.mxu0 0.0
    %483 = vmatmul.mubr.f32.gmra.mrb[0].mxu0 %v394
    %v484 = vpop.f32.mrb[0].mxu0
    %v485 = vadd.f32 %v416, %v484
    %v486 = vpop.f32.mrb[0].mxu0
    %487 = vdwg.mxu0
    %488 = vst [vmem:[#allocation10] sm:$0xff] %v485
    // Predicated region
    $region70: #{tpu_custom_call.1} parent=1 // pred_check
      _
    $region71: #{tpu_custom_call.1} parent=1 // pred_check_branch
      %490 = sbr.rel (0) target = $region73
    $region72: #{tpu_custom_call.1} parent=1 // pred_region
      %s492 = ssub.s32 128, 128
      %493 = vsyncadd [#allocation4], %s492
      %s495 = sshll.u32 [#allocation10], 4
      %s496 = int_to_ptr.vmem [resolvable:$true] %s495
      %498 = dma.vmem_to_hbm [thread:$0]  %s496, 128, %s13, [#allocation4]
    $region73: #{tpu_custom_call.1} parent=1 // pred_fallthru
      _
    // Predicated region
    $region74: #{tpu_custom_call.1} parent=1 // pred_check
      _
    $region75: #{tpu_custom_call.1} parent=1 // pred_check_branch
      %500 = sbr.rel (0) target = $region77
    $region76: #{tpu_custom_call.1} parent=1 // pred_region
      %501 = dma.done [#allocation4], 128
    $region77: #{tpu_custom_call.1} parent=1 // pred_fallthru
      _
    %502 = vsyncpa [#allocation3], 1
    %503 = vsyncpa [#allocation6], 1
    %504 = vsyncpa [#allocation9], 1
    %505 = vsyncpa [#allocation4], 1

</llo_original>
